<compile_context>
chip_gen: v5e
topology: v5e:2x2
jax: 0.10.0
libtpu: 0.0.40
codegen_flags: <defaults>
</compile_context>

<pallas_src>
import functools

import jax
import jax.numpy as jnp
from jax import lax
from jax.experimental import pallas as pl
from jax.experimental.pallas import tpu as pltpu


def mha_kernel(x_ref, w_qkv_ref, b_qkv_ref, w_out_ref, b_out_ref, out_ref,
               *, n_heads):
    x = x_ref[0]                       # (S, D)
    S, D = x.shape
    HD = n_heads * D

    # Fused QKV projection for every head: one lane-dense (S, D) x (D, 3*H*D)
    # matmul (weights already packed as "in x out" in the wrapper).
    qkv = jnp.dot(x, w_qkv_ref[...],
                  preferred_element_type=jnp.float32) + b_qkv_ref[...]   # (S, 3*H*D)

    scale = D ** -0.5                  # q.size(-1) == d_model, as in the reference
    q_all = qkv[:, :HD] * scale        # fold scale into q (cheaper than scaling scores)
    k_all = qkv[:, HD:2 * HD]
    v_all = qkv[:, 2 * HD:]

    head_outs = []
    for h in range(n_heads):           # static loop, H is a compile-time constant
        sl = slice(h * D, (h + 1) * D)
        q = q_all[:, sl]
        k = k_all[:, sl]
        v = v_all[:, sl]

        # q @ k.T without an in-kernel transpose: contract the last dims on the MXU.
        scores = lax.dot_general(q, k, (((1,), (1,)), ((), ())),
                                 preferred_element_type=jnp.float32)     # (S, S)
        scores_max = jnp.max(scores, axis=-1, keepdims=True)
        e = jnp.exp(scores - scores_max)
        inv = pl.reciprocal(jnp.sum(e, axis=-1, keepdims=True), approx=True)
        p = e * inv
        head_outs.append(jnp.dot(p, v, preferred_element_type=jnp.float32))  # (S, D)

    cat = jnp.concatenate(head_outs, axis=-1)                            # (S, H*D)
    out = jnp.dot(cat, w_out_ref[...],
                  preferred_element_type=jnp.float32) + b_out_ref[...]   # (S, D)
    out_ref[0] = out.astype(out_ref.dtype)


def multi_head_attention(x, wq, bq, wk, bk, wv, bv, w_out, b_out):
    """
    x:        (B, S, D) float32
    wq/wk/wv: (H, D, D) per-head nn.Linear weights (torch layout: out x in)
    bq/bk/bv: (H, D)
    w_out:    (D, H*D)  final nn.Linear(n_heads*d_model, d_model) weight
    b_out:    (D,)
    """
    B, S, D = x.shape
    H = wq.shape[0]
    HD = H * D

    # Pack per-head (out, in) weights into a single pre-transposed (in, H*out)
    # matrix so the kernel does x @ W directly (no .T inside the kernel).
    def pack(w):
        return jnp.transpose(w, (2, 0, 1)).reshape(D, HD)

    w_qkv = jnp.concatenate([pack(wq), pack(wk), pack(wv)], axis=1)      # (D, 3*H*D)
    b_qkv = jnp.concatenate(
        [bq.reshape(HD), bk.reshape(HD), bv.reshape(HD)]).reshape(1, 3 * HD)
    w_out_t = w_out.T                                                    # (H*D, D)
    b_out2 = b_out.reshape(1, D)

    kernel = functools.partial(mha_kernel, n_heads=H)

    return pl.pallas_call(
        kernel,
        out_shape=jax.ShapeDtypeStruct((B, S, D), x.dtype),
        grid=(B,),
        in_specs=[
            pl.BlockSpec((1, S, D), lambda b: (b, 0, 0)),     # x: one batch per step
            pl.BlockSpec((D, 3 * HD), lambda b: (0, 0)),      # packed QKV weights (resident)
            pl.BlockSpec((1, 3 * HD), lambda b: (0, 0)),      # packed QKV biases
            pl.BlockSpec((HD, D), lambda b: (0, 0)),          # output projection (resident)
            pl.BlockSpec((1, D), lambda b: (0, 0)),           # output bias
        ],
        out_specs=pl.BlockSpec((1, S, D), lambda b: (b, 0, 0)),
        compiler_params=pltpu.CompilerParams(
            dimension_semantics=("parallel",)),               # batch axis -> megacore on v7x
    )(x, w_qkv, b_qkv, w_out_t, b_out2)


def reference(x, wq, bq, wk, bk, wv, bv, w_out, b_out):
    """Plain-JAX reference reproducing the PyTorch module semantics."""
    B, S, D = x.shape
    H = wq.shape[0]
    head_outs = []
    for h in range(H):
        q = x @ wq[h].T + bq[h]
        k = x @ wk[h].T + bk[h]
        v = x @ wv[h].T + bv[h]
        scale = D ** (-0.5)
        scores = jax.nn.softmax(jnp.einsum('bsd,btd->bst', q, k) * scale, axis=-1)
        head_outs.append(jnp.einsum('bst,btd->bsd', scores, v))
    cat = jnp.concatenate(head_outs, axis=-1)                 # (B, S, H*D)
    return cat @ w_out.T + b_out


if __name__ == "__main__":
    B, S, D, H = 2, 8, 32, 4

    key = jax.random.PRNGKey(0)
    ks = jax.random.split(key, 10)
    x = jax.random.normal(ks[0], (B, S, D), dtype=jnp.float32)

    scale = 0.1
    wq = scale * jax.random.normal(ks[1], (H, D, D), dtype=jnp.float32)
    bq = scale * jax.random.normal(ks[2], (H, D), dtype=jnp.float32)
    wk = scale * jax.random.normal(ks[3], (H, D, D), dtype=jnp.float32)
    bk = scale * jax.random.normal(ks[4], (H, D), dtype=jnp.float32)
    wv = scale * jax.random.normal(ks[5], (H, D, D), dtype=jnp.float32)
    bv = scale * jax.random.normal(ks[6], (H, D), dtype=jnp.float32)
    w_out = scale * jax.random.normal(ks[7], (D, H * D), dtype=jnp.float32)
    b_out = scale * jax.random.normal(ks[8], (D,), dtype=jnp.float32)

    out = multi_head_attention(x, wq, bq, wk, bk, wv, bv, w_out, b_out)
    out = jax.block_until_ready(out)

    ref = reference(x, wq, bq, wk, bk, wv, bv, w_out, b_out)
    assert out.shape == (B, S, D)
    # Tolerance loosened slightly because pl.reciprocal(approx=True) introduces
    # ~1e-3-level relative error in the softmax weights.
    assert jnp.allclose(out, ref, atol=5e-3, rtol=5e-3), "mismatch vs reference"

    print("KERNEL_OK")
</pallas_src>

<mosaic_0001>
module attributes {stable_mosaic.version = 11 : i64} {
  func.func @mha_kernel(%arg0: i32, %arg1: memref<1x8x32xf32, #tpu.memory_space<vmem>>, %arg2: memref<32x384xf32, #tpu.memory_space<vmem>>, %arg3: memref<1x384xf32, #tpu.memory_space<vmem>>, %arg4: memref<128x32xf32, #tpu.memory_space<vmem>>, %arg5: memref<1x32xf32, #tpu.memory_space<vmem>>, %arg6: memref<1x8x32xf32, #tpu.memory_space<vmem>>) attributes {dimension_semantics = [#tpu.dimension_semantics<parallel>], iteration_bounds = array<i64: 2>, scalar_prefetch = 0 : i64, scratch_operands = 0 : i64, tpu.core_type = #tpu.core_type<tc>, window_params = [{transform_indices = @transform_0, window_bounds = array<i64: 1, 8, 32>}, {pipeline_mode = #tpu.pipeline_mode<synchronous>, transform_indices = @transform_1, window_bounds = array<i64: 32, 384>}, {pipeline_mode = #tpu.pipeline_mode<synchronous>, transform_indices = @transform_2, window_bounds = array<i64: 1, 384>}, {pipeline_mode = #tpu.pipeline_mode<synchronous>, transform_indices = @transform_3, window_bounds = array<i64: 128, 32>}, {pipeline_mode = #tpu.pipeline_mode<synchronous>, transform_indices = @transform_4, window_bounds = array<i64: 1, 32>}, {transform_indices = @transform_5, window_bounds = array<i64: 1, 8, 32>}]} {
    %c0 = arith.constant 0 : index
    %c0_0 = arith.constant 0 : index
    %c0_1 = arith.constant 0 : index
    %0 = vector.load %arg1[%c0, %c0_0, %c0_1] : memref<1x8x32xf32, #tpu.memory_space<vmem>>, vector<1x8x32xf32>
    %1 = vector.shape_cast %0 : vector<1x8x32xf32> to vector<8x32xf32>
    %c0_2 = arith.constant 0 : index
    %c0_3 = arith.constant 0 : index
    %2 = vector.load %arg2[%c0_2, %c0_3] : memref<32x384xf32, #tpu.memory_space<vmem>>, vector<32x384xf32>
    %cst = arith.constant dense<0.000000e+00> : vector<8x384xf32>
    %3 = tpu.matmul %1, %2, %cst {dimension_numbers = #tpu.dot_dimension_numbers<[1], [0], [0], [1], [0, 0, 1, 1], [], []>} : vector<8x32xf32>, vector<32x384xf32>, vector<8x384xf32> -> vector<8x384xf32>
    %c0_4 = arith.constant 0 : index
    %c0_5 = arith.constant 0 : index
    %4 = vector.load %arg3[%c0_4, %c0_5] : memref<1x384xf32, #tpu.memory_space<vmem>>, vector<1x384xf32>
    %5 = vector.broadcast %4 : vector<1x384xf32> to vector<8x384xf32>
    %6 = arith.addf %3, %5 : vector<8x384xf32>
    %7 = vector.extract_strided_slice %6 {offsets = [0, 0], sizes = [8, 128], strides = [1, 1]} : vector<8x384xf32> to vector<8x128xf32>
    %cst_6 = arith.constant 0.176776692 : f32
    %8 = vector.broadcast %cst_6 : f32 to vector<8x128xf32>
    %9 = arith.mulf %7, %8 : vector<8x128xf32>
    %10 = vector.extract_strided_slice %6 {offsets = [0, 128], sizes = [8, 128], strides = [1, 1]} : vector<8x384xf32> to vector<8x128xf32>
    %11 = vector.extract_strided_slice %6 {offsets = [0, 256], sizes = [8, 128], strides = [1, 1]} : vector<8x384xf32> to vector<8x128xf32>
    %12 = vector.extract_strided_slice %9 {offsets = [0, 0], sizes = [8, 32], strides = [1, 1]} : vector<8x128xf32> to vector<8x32xf32>
    %13 = vector.extract_strided_slice %10 {offsets = [0, 0], sizes = [8, 32], strides = [1, 1]} : vector<8x128xf32> to vector<8x32xf32>
    %14 = vector.extract_strided_slice %11 {offsets = [0, 0], sizes = [8, 32], strides = [1, 1]} : vector<8x128xf32> to vector<8x32xf32>
    %cst_7 = arith.constant dense<0.000000e+00> : vector<8x8xf32>
    %15 = tpu.matmul %12, %13, %cst_7 {dimension_numbers = #tpu.dot_dimension_numbers<[1], [1], [0], [0], [0, 0, 1, 0], [], []>} : vector<8x32xf32>, vector<8x32xf32>, vector<8x8xf32> -> vector<8x8xf32>
    %cst_8 = arith.constant dense<0xFF800000> : vector<8xf32>
    %16 = vector.multi_reduction <maximumf>, %15, %cst_8 [1] : vector<8x8xf32> to vector<8xf32>
    %17 = vector.shape_cast %16 : vector<8xf32> to vector<8x1xf32>
    %18 = vector.broadcast %17 : vector<8x1xf32> to vector<8x8xf32>
    %19 = arith.subf %15, %18 : vector<8x8xf32>
    %20 = math.exp %19 : vector<8x8xf32>
    %cst_9 = arith.constant dense<0.000000e+00> : vector<8xf32>
    %21 = vector.multi_reduction <add>, %20, %cst_9 [1] : vector<8x8xf32> to vector<8xf32>
    %22 = vector.shape_cast %21 : vector<8xf32> to vector<8x1xf32>
    %23 = tpu.reciprocal %22 {approx = true} : vector<8x1xf32> -> vector<8x1xf32>
    %24 = vector.broadcast %23 : vector<8x1xf32> to vector<8x8xf32>
    %25 = arith.mulf %20, %24 : vector<8x8xf32>
    %cst_10 = arith.constant dense<0.000000e+00> : vector<8x32xf32>
    %26 = tpu.matmul %25, %14, %cst_10 {dimension_numbers = #tpu.dot_dimension_numbers<[1], [0], [0], [1], [0, 0, 1, 1], [], []>} : vector<8x8xf32>, vector<8x32xf32>, vector<8x32xf32> -> vector<8x32xf32>
    %27 = vector.extract_strided_slice %9 {offsets = [0, 32], sizes = [8, 32], strides = [1, 1]} : vector<8x128xf32> to vector<8x32xf32>
    %28 = vector.extract_strided_slice %10 {offsets = [0, 32], sizes = [8, 32], strides = [1, 1]} : vector<8x128xf32> to vector<8x32xf32>
    %29 = vector.extract_strided_slice %11 {offsets = [0, 32], sizes = [8, 32], strides = [1, 1]} : vector<8x128xf32> to vector<8x32xf32>
    %cst_11 = arith.constant dense<0.000000e+00> : vector<8x8xf32>
    %30 = tpu.matmul %27, %28, %cst_11 {dimension_numbers = #tpu.dot_dimension_numbers<[1], [1], [0], [0], [0, 0, 1, 0], [], []>} : vector<8x32xf32>, vector<8x32xf32>, vector<8x8xf32> -> vector<8x8xf32>
    %cst_12 = arith.constant dense<0xFF800000> : vector<8xf32>
    %31 = vector.multi_reduction <maximumf>, %30, %cst_12 [1] : vector<8x8xf32> to vector<8xf32>
    %32 = vector.shape_cast %31 : vector<8xf32> to vector<8x1xf32>
    %33 = vector.broadcast %32 : vector<8x1xf32> to vector<8x8xf32>
    %34 = arith.subf %30, %33 : vector<8x8xf32>
    %35 = math.exp %34 : vector<8x8xf32>
    %cst_13 = arith.constant dense<0.000000e+00> : vector<8xf32>
    %36 = vector.multi_reduction <add>, %35, %cst_13 [1] : vector<8x8xf32> to vector<8xf32>
    %37 = vector.shape_cast %36 : vector<8xf32> to vector<8x1xf32>
    %38 = tpu.reciprocal %37 {approx = true} : vector<8x1xf32> -> vector<8x1xf32>
    %39 = vector.broadcast %38 : vector<8x1xf32> to vector<8x8xf32>
    %40 = arith.mulf %35, %39 : vector<8x8xf32>
    %cst_14 = arith.constant dense<0.000000e+00> : vector<8x32xf32>
    %41 = tpu.matmul %40, %29, %cst_14 {dimension_numbers = #tpu.dot_dimension_numbers<[1], [0], [0], [1], [0, 0, 1, 1], [], []>} : vector<8x8xf32>, vector<8x32xf32>, vector<8x32xf32> -> vector<8x32xf32>
    %42 = vector.extract_strided_slice %9 {offsets = [0, 64], sizes = [8, 32], strides = [1, 1]} : vector<8x128xf32> to vector<8x32xf32>
    %43 = vector.extract_strided_slice %10 {offsets = [0, 64], sizes = [8, 32], strides = [1, 1]} : vector<8x128xf32> to vector<8x32xf32>
    %44 = vector.extract_strided_slice %11 {offsets = [0, 64], sizes = [8, 32], strides = [1, 1]} : vector<8x128xf32> to vector<8x32xf32>
    %cst_15 = arith.constant dense<0.000000e+00> : vector<8x8xf32>
    %45 = tpu.matmul %42, %43, %cst_15 {dimension_numbers = #tpu.dot_dimension_numbers<[1], [1], [0], [0], [0, 0, 1, 0], [], []>} : vector<8x32xf32>, vector<8x32xf32>, vector<8x8xf32> -> vector<8x8xf32>
    %cst_16 = arith.constant dense<0xFF800000> : vector<8xf32>
    %46 = vector.multi_reduction <maximumf>, %45, %cst_16 [1] : vector<8x8xf32> to vector<8xf32>
    %47 = vector.shape_cast %46 : vector<8xf32> to vector<8x1xf32>
    %48 = vector.broadcast %47 : vector<8x1xf32> to vector<8x8xf32>
    %49 = arith.subf %45, %48 : vector<8x8xf32>
    %50 = math.exp %49 : vector<8x8xf32>
    %cst_17 = arith.constant dense<0.000000e+00> : vector<8xf32>
    %51 = vector.multi_reduction <add>, %50, %cst_17 [1] : vector<8x8xf32> to vector<8xf32>
    %52 = vector.shape_cast %51 : vector<8xf32> to vector<8x1xf32>
    %53 = tpu.reciprocal %52 {approx = true} : vector<8x1xf32> -> vector<8x1xf32>
    %54 = vector.broadcast %53 : vector<8x1xf32> to vector<8x8xf32>
    %55 = arith.mulf %50, %54 : vector<8x8xf32>
    %cst_18 = arith.constant dense<0.000000e+00> : vector<8x32xf32>
    %56 = tpu.matmul %55, %44, %cst_18 {dimension_numbers = #tpu.dot_dimension_numbers<[1], [0], [0], [1], [0, 0, 1, 1], [], []>} : vector<8x8xf32>, vector<8x32xf32>, vector<8x32xf32> -> vector<8x32xf32>
    %57 = vector.extract_strided_slice %9 {offsets = [0, 96], sizes = [8, 32], strides = [1, 1]} : vector<8x128xf32> to vector<8x32xf32>
    %58 = vector.extract_strided_slice %10 {offsets = [0, 96], sizes = [8, 32], strides = [1, 1]} : vector<8x128xf32> to vector<8x32xf32>
    %59 = vector.extract_strided_slice %11 {offsets = [0, 96], sizes = [8, 32], strides = [1, 1]} : vector<8x128xf32> to vector<8x32xf32>
    %cst_19 = arith.constant dense<0.000000e+00> : vector<8x8xf32>
    %60 = tpu.matmul %57, %58, %cst_19 {dimension_numbers = #tpu.dot_dimension_numbers<[1], [1], [0], [0], [0, 0, 1, 0], [], []>} : vector<8x32xf32>, vector<8x32xf32>, vector<8x8xf32> -> vector<8x8xf32>
    %cst_20 = arith.constant dense<0xFF800000> : vector<8xf32>
    %61 = vector.multi_reduction <maximumf>, %60, %cst_20 [1] : vector<8x8xf32> to vector<8xf32>
    %62 = vector.shape_cast %61 : vector<8xf32> to vector<8x1xf32>
    %63 = vector.broadcast %62 : vector<8x1xf32> to vector<8x8xf32>
    %64 = arith.subf %60, %63 : vector<8x8xf32>
    %65 = math.exp %64 : vector<8x8xf32>
    %cst_21 = arith.constant dense<0.000000e+00> : vector<8xf32>
    %66 = vector.multi_reduction <add>, %65, %cst_21 [1] : vector<8x8xf32> to vector<8xf32>
    %67 = vector.shape_cast %66 : vector<8xf32> to vector<8x1xf32>
    %68 = tpu.reciprocal %67 {approx = true} : vector<8x1xf32> -> vector<8x1xf32>
    %69 = vector.broadcast %68 : vector<8x1xf32> to vector<8x8xf32>
    %70 = arith.mulf %65, %69 : vector<8x8xf32>
    %cst_22 = arith.constant dense<0.000000e+00> : vector<8x32xf32>
    %71 = tpu.matmul %70, %59, %cst_22 {dimension_numbers = #tpu.dot_dimension_numbers<[1], [0], [0], [1], [0, 0, 1, 1], [], []>} : vector<8x8xf32>, vector<8x32xf32>, vector<8x32xf32> -> vector<8x32xf32>
    %72 = tpu.concatenate %26, %41, %56, %71 in 1 : vector<8x32xf32>, vector<8x32xf32>, vector<8x32xf32>, vector<8x32xf32> -> vector<8x128xf32>
    %c0_23 = arith.constant 0 : index
    %c0_24 = arith.constant 0 : index
    %73 = vector.load %arg4[%c0_23, %c0_24] : memref<128x32xf32, #tpu.memory_space<vmem>>, vector<128x32xf32>
    %cst_25 = arith.constant dense<0.000000e+00> : vector<8x32xf32>
    %74 = tpu.matmul %72, %73, %cst_25 {dimension_numbers = #tpu.dot_dimension_numbers<[1], [0], [0], [1], [0, 0, 1, 1], [], []>} : vector<8x128xf32>, vector<128x32xf32>, vector<8x32xf32> -> vector<8x32xf32>
    %c0_26 = arith.constant 0 : index
    %c0_27 = arith.constant 0 : index
    %75 = vector.load %arg5[%c0_26, %c0_27] : memref<1x32xf32, #tpu.memory_space<vmem>>, vector<1x32xf32>
    %76 = vector.broadcast %75 : vector<1x32xf32> to vector<8x32xf32>
    %77 = arith.addf %74, %76 : vector<8x32xf32>
    %c0_28 = arith.constant 0 : index
    %c0_29 = arith.constant 0 : index
    %c0_30 = arith.constant 0 : index
    %78 = vector.load %arg6[%c0_28, %c0_29, %c0_30] : memref<1x8x32xf32, #tpu.memory_space<vmem>>, vector<1x8x32xf32>
    %79 = vector.shape_cast %78 : vector<1x8x32xf32> to vector<8x32xf32>
    %80 = vector.shape_cast %77 : vector<8x32xf32> to vector<1x8x32xf32>
    tpu.vector_store %arg6[%c0_28, %c0_29, %c0_30], %80 {strides = array<i32>} : memref<1x8x32xf32, #tpu.memory_space<vmem>>, vector<1x8x32xf32>,
    return
  }
  func.func @transform_0(%arg0: i32) -> (i32, i32, i32) {
    %c0_i32 = arith.constant 0 : i32
    %c0_i32_0 = arith.constant 0 : i32
    %c0_i32_1 = arith.constant 0 : i32
    return %arg0, %c0_i32, %c0_i32_0 : i32, i32, i32
  }
  func.func @transform_1(%arg0: i32) -> (i32, i32) {
    %c0_i32 = arith.constant 0 : i32
    %c0_i32_0 = arith.constant 0 : i32
    %c0_i32_1 = arith.constant 0 : i32
    return %c0_i32, %c0_i32_0 : i32, i32
  }
  func.func @transform_2(%arg0: i32) -> (i32, i32) {
    %c0_i32 = arith.constant 0 : i32
    %c0_i32_0 = arith.constant 0 : i32
    %c0_i32_1 = arith.constant 0 : i32
    return %c0_i32, %c0_i32_0 : i32, i32
  }
  func.func @transform_3(%arg0: i32) -> (i32, i32) {
    %c0_i32 = arith.constant 0 : i32
    %c0_i32_0 = arith.constant 0 : i32
    %c0_i32_1 = arith.constant 0 : i32
    return %c0_i32, %c0_i32_0 : i32, i32
  }
  func.func @transform_4(%arg0: i32) -> (i32, i32) {
    %c0_i32 = arith.constant 0 : i32
    %c0_i32_0 = arith.constant 0 : i32
    %c0_i32_1 = arith.constant 0 : i32
    return %c0_i32, %c0_i32_0 : i32, i32
  }
  func.func @transform_5(%arg0: i32) -> (i32, i32, i32) {
    %c0_i32 = arith.constant 0 : i32
    %c0_i32_0 = arith.constant 0 : i32
    %c0_i32_1 = arith.constant 0 : i32
    return %arg0, %c0_i32, %c0_i32_0 : i32, i32, i32
  }
}

</mosaic_0001>

<llo_original>
// kernel: tpu_custom_call.1
$region0: #{tpu_custom_call.1}
  #allocation0 [shape = 'u32[]', space=smem, size = 0x4, offset = 0x4, fixed_abs, tag = 'smem constant byte address 0x4 - core index']
  #allocation1 [shape = 'u32[72,128]{1,0:T(1,128)}', space=vmem, size = 0x9000, scoped, tag = 'internal scratch']
  %s0 = inlined_call_operand.vmem [shape: f32[2,8,32], index: 0, kind: input, shape index: {}]
  %s1 = inlined_call_operand.vmem [shape: f32[32,384], index: 1, kind: input, shape index: {}]
  %s2 = inlined_call_operand.vmem [shape: f32[1,384], index: 2, kind: input, shape index: {}]
  %s3 = inlined_call_operand.vmem [shape: f32[128,32], index: 3, kind: input, shape index: {}]
  %s4 = inlined_call_operand.vmem [shape: f32[1,32], index: 4, kind: input, shape index: {}]
  %s5 = inlined_call_operand.hbm [shape: f32[2,8,32], index: 5, kind: output, shape index: {}]
  %s6 = sld [smem:[#allocation0]]
  $region53: #{tpu_custom_call.1} parent=0
    _
  %s8 = ssub.s32 1, %s6
  %s9 = scalar_select 0, %s8, %s6
  $region1: #{tpu_custom_call.1} parent=0
    #allocation2 [shape = 'u8[8192]{0}', space=vmem, size = 0x2000, scoped, tag = 'output window, operand 0']
    #allocation3 [shape = 's32[2]{0}', space=sflag, size = 0x8, scoped, tag = 'scoped memory for tpu_custom_call.1']
    %10 = vsyncpa [#allocation3], 0
    %s11 = scalar_lea.sflag [#allocation3], 1
    %12 = vsyncpa %s11, 0
    loop: start=0, step=1, limit=4
    $region2: #{tpu_custom_call.1} parent=1 // loop_pre_header
      _
    $region3: #{tpu_custom_call.1} parent=1 // loop_header
      %s14 = sphi 0, %s18
      %p15 = scmp.ge.s32.totalorder %s14, 4
      %s24 = sphi 0, %s26
      %s27 = sphi 0, %s24
      %s28 = sphi 0, %s27
      %s44 = sphi 0, %s28
      %s48 = sphi 0, %s48
      %s50 = sphi 0, %s48
      %s51 = sphi 0, %s50
      %s65 = sphi 0, %s51
      %s69 = sphi 0, %s69
      %s71 = sphi 0, %s69
      %s72 = sphi 0, %s71
      %s86 = sphi 0, %s72
      %s90 = sphi 0, %s90
      %s92 = sphi 0, %s90
      %s93 = sphi 0, %s92
      %s107 = sphi 0, %s93
      %s111 = sphi 0, %s111
      %s113 = sphi 0, %s111
      %s114 = sphi 0, %s113
      %s128 = sphi 0, %s114
      %s134 = sphi 0, %s136
      %s137 = sphi 0, %s134
      %s138 = sphi 0, %s137
      %s154 = sphi 0, %s138
    $region4: #{tpu_custom_call.1} parent=1 // loop_header_branch
      %17 = sbr.rel (%p15) target = $region8
    $region5: #{tpu_custom_call.1} parent=1 // loop_body
      %s19 = ssub.s32 %s14, 1
      %s20 = ssub.s32 %s14, 2
      %s21 = sadd.s32 %s14, 1
      %s22 = ssub.s32 %s14, %s21
      %p23 = scmp.eq.s32.totalorder %s22, 0
      %s25 = sadd.s32 %s24, 1
      %s26 = scalar_select %p23, %s24, %s25
      %p29 = pneg %p23
      %p30 = scmp.eq.s32.totalorder %s14, 1
      %p31 = por %p29, %p30
      %p32 = scmp.ne.s32.totalorder %s24, %s27
      %p33 = scmp.eq.s32.totalorder %s14, 0
      %p34 = por %p32, %p33
      %p35 = scmp.ne.s32.totalorder %s24, %s27
      %p36 = scmp.eq.s32.totalorder %s19, 1
      %p37 = por %p35, %p36
      %p38 = scmp.ne.s32.totalorder %s27, %s28
      %p39 = scmp.eq.s32.totalorder %s19, 0
      %p40 = por %p38, %p39
      %p41 = scmp.ne.s32.totalorder %s27, %s28
      %p42 = scmp.eq.s32.totalorder %s20, 1
      %p43 = por %p41, %p42
      %p45 = scmp.ne.s32.totalorder %s28, %s44
      %p46 = scmp.eq.s32.totalorder %s20, 0
      %p47 = por %p45, %p46
      %s49 = sadd.s32 %s48, 1
      %p52 = scmp.eq.s32.totalorder %s14, 1
      %p53 = scmp.ne.s32.totalorder %s48, %s50
      %p54 = scmp.eq.s32.totalorder %s14, 0
      %p55 = por %p53, %p54
      %p56 = scmp.ne.s32.totalorder %s48, %s50
      %p57 = scmp.eq.s32.totalorder %s19, 1
      %p58 = por %p56, %p57
      %p59 = scmp.ne.s32.totalorder %s50, %s51
      %p60 = scmp.eq.s32.totalorder %s19, 0
      %p61 = por %p59, %p60
      %p62 = scmp.ne.s32.totalorder %s50, %s51
      %p63 = scmp.eq.s32.totalorder %s20, 1
      %p64 = por %p62, %p63
      %p66 = scmp.ne.s32.totalorder %s51, %s65
      %p67 = scmp.eq.s32.totalorder %s20, 0
      %p68 = por %p66, %p67
      %s70 = sadd.s32 %s69, 1
      %p73 = scmp.eq.s32.totalorder %s14, 1
      %p74 = scmp.ne.s32.totalorder %s69, %s71
      %p75 = scmp.eq.s32.totalorder %s14, 0
      %p76 = por %p74, %p75
      %p77 = scmp.ne.s32.totalorder %s69, %s71
      %p78 = scmp.eq.s32.totalorder %s19, 1
      %p79 = por %p77, %p78
      %p80 = scmp.ne.s32.totalorder %s71, %s72
      %p81 = scmp.eq.s32.totalorder %s19, 0
      %p82 = por %p80, %p81
      %p83 = scmp.ne.s32.totalorder %s71, %s72
      %p84 = scmp.eq.s32.totalorder %s20, 1
      %p85 = por %p83, %p84
      %p87 = scmp.ne.s32.totalorder %s72, %s86
      %p88 = scmp.eq.s32.totalorder %s20, 0
      %p89 = por %p87, %p88
      %s91 = sadd.s32 %s90, 1
      %p94 = scmp.eq.s32.totalorder %s14, 1
      %p95 = scmp.ne.s32.totalorder %s90, %s92
      %p96 = scmp.eq.s32.totalorder %s14, 0
      %p97 = por %p95, %p96
      %p98 = scmp.ne.s32.totalorder %s90, %s92
      %p99 = scmp.eq.s32.totalorder %s19, 1
      %p100 = por %p98, %p99
      %p101 = scmp.ne.s32.totalorder %s92, %s93
      %p102 = scmp.eq.s32.totalorder %s19, 0
      %p103 = por %p101, %p102
      %p104 = scmp.ne.s32.totalorder %s92, %s93
      %p105 = scmp.eq.s32.totalorder %s20, 1
      %p106 = por %p104, %p105
      %p108 = scmp.ne.s32.totalorder %s93, %s107
      %p109 = scmp.eq.s32.totalorder %s20, 0
      %p110 = por %p108, %p109
      %s112 = sadd.s32 %s111, 1
      %p115 = scmp.eq.s32.totalorder %s14, 1
      %p116 = scmp.ne.s32.totalorder %s111, %s113
      %p117 = scmp.eq.s32.totalorder %s14, 0
      %p118 = por %p116, %p117
      %p119 = scmp.ne.s32.totalorder %s111, %s113
      %p120 = scmp.eq.s32.totalorder %s19, 1
      %p121 = por %p119, %p120
      %p122 = scmp.ne.s32.totalorder %s113, %s114
      %p123 = scmp.eq.s32.totalorder %s19, 0
      %p124 = por %p122, %p123
      %p125 = scmp.ne.s32.totalorder %s113, %s114
      %p126 = scmp.eq.s32.totalorder %s20, 1
      %p127 = por %p125, %p126
      %p129 = scmp.ne.s32.totalorder %s114, %s128
      %p130 = scmp.eq.s32.totalorder %s20, 0
      %p131 = por %p129, %p130
      %s132 = ssub.s32 %s14, %s21
      %p133 = scmp.eq.s32.totalorder %s132, 0
      %s135 = sadd.s32 %s134, 1
      %s136 = scalar_select %p133, %s134, %s135
      %p139 = pneg %p133
      %p140 = scmp.eq.s32.totalorder %s14, 1
      %p141 = por %p139, %p140
      %p142 = scmp.ne.s32.totalorder %s134, %s137
      %p143 = scmp.eq.s32.totalorder %s14, 0
      %p144 = por %p142, %p143
      %p145 = scmp.ne.s32.totalorder %s134, %s137
      %p146 = scmp.eq.s32.totalorder %s19, 1
      %p147 = por %p145, %p146
      %p148 = scmp.ne.s32.totalorder %s137, %s138
      %p149 = scmp.eq.s32.totalorder %s19, 0
      %p150 = por %p148, %p149
      %p151 = scmp.ne.s32.totalorder %s137, %s138
      %p152 = scmp.eq.s32.totalorder %s20, 1
      %p153 = por %p151, %p152
      %p155 = scmp.ne.s32.totalorder %s138, %s154
      %p156 = scmp.eq.s32.totalorder %s20, 0
      %p157 = por %p155, %p156
      %p158 = scmp.le.s32.totalorder 1, %s14
      %p159 = scmp.lt.s32.totalorder %s14, 3
      %p160 = pnand %p158, %p159
      %p161 = pneg %p160
      // Predicated region
      $region9: #{tpu_custom_call.1} parent=5 // pred_check
        _
      $region10: #{tpu_custom_call.1} parent=5 // pred_check_branch
        %163 = sbr.rel (%p160) target = $region12
      $region11: #{tpu_custom_call.1} parent=5 // pred_region
        %s164 = ssub.s32 %s14, 1
        // Predicated region
        $region13: #{tpu_custom_call.1} parent=11 // pred_check
          %p165 = pneg %p61
        $region14: #{tpu_custom_call.1} parent=11 // pred_check_branch
          %167 = sbr.rel (%p165) target = $region16
        $region15: #{tpu_custom_call.1} parent=11 // pred_region
          _
        $region16: #{tpu_custom_call.1} parent=11 // pred_fallthru
          _
        // Predicated region
        $region17: #{tpu_custom_call.1} parent=11 // pred_check
          %p168 = pneg %p82
        $region18: #{tpu_custom_call.1} parent=11 // pred_check_branch
          %170 = sbr.rel (%p168) target = $region20
        $region19: #{tpu_custom_call.1} parent=11 // pred_region
          _
        $region20: #{tpu_custom_call.1} parent=11 // pred_fallthru
          _
        // Predicated region
        $region21: #{tpu_custom_call.1} parent=11 // pred_check
          %p171 = pneg %p103
        $region22: #{tpu_custom_call.1} parent=11 // pred_check_branch
          %173 = sbr.rel (%p171) target = $region24
        $region23: #{tpu_custom_call.1} parent=11 // pred_region
          _
        $region24: #{tpu_custom_call.1} parent=11 // pred_fallthru
          _
        // Predicated region
        $region25: #{tpu_custom_call.1} parent=11 // pred_check
          %p174 = pneg %p124
        $region26: #{tpu_custom_call.1} parent=11 // pred_check_branch
          %176 = sbr.rel (%p174) target = $region28
        $region27: #{tpu_custom_call.1} parent=11 // pred_region
          _
        $region28: #{tpu_custom_call.1} parent=11 // pred_fallthru
          _
      $region12: #{tpu_custom_call.1} parent=5 // pred_fallthru
        _
      %p177 = scmp.lt.s32.totalorder %s14, 2
      // Predicated region
      $region29: #{tpu_custom_call.1} parent=5 // pred_check
        %p178 = pneg %p177
      $region30: #{tpu_custom_call.1} parent=5 // pred_check_branch
        %180 = sbr.rel (%p178) target = $region32
      $region31: #{tpu_custom_call.1} parent=5 // pred_region
        // Predicated region
        $region33: #{tpu_custom_call.1} parent=31 // pred_check
          %p181 = pneg %p34
        $region34: #{tpu_custom_call.1} parent=31 // pred_check_branch
          %183 = sbr.rel (%p181) target = $region36
        $region35: #{tpu_custom_call.1} parent=31 // pred_region
          %p184 = scmp.lt.s32.totalorder %s14, 1
          %s185 = scalar_select %p184, %s14, 1
          %s186 = smul.addr %s185, 8
          %s187 = scalar_lea.vmem %s0, %s186
        $region36: #{tpu_custom_call.1} parent=31 // pred_fallthru
          _
      $region32: #{tpu_custom_call.1} parent=5 // pred_fallthru
        _
      %p188 = scmp.le.s32.totalorder 1, %s14
      %p189 = scmp.lt.s32.totalorder %s14, 3
      %p190 = pnand %p188, %p189
      %p191 = pneg %p190
      // Predicated region
      $region37: #{tpu_custom_call.1} parent=5 // pred_check
        _
      $region38: #{tpu_custom_call.1} parent=5 // pred_check_branch
        %193 = sbr.rel (%p190) target = $region40
      $region39: #{tpu_custom_call.1} parent=5 // pred_region
        %s194 = ssub.s32 %s14, 1
        %p195 = scmp.lt.s32.totalorder %s19, 1
        %s196 = scalar_select %p195, %s19, 1
        %s197 = smul.addr %s196, 8
        %s198 = scalar_lea.vmem %s0, %s197
        %p199 = pneg %p40
        %p200 = pneg %p37
        %p201 = pneg %p61
        %p202 = pneg %p58
        %p203 = pneg %p82
        %p204 = pneg %p79
        %p205 = pneg %p103
        %p206 = pneg %p100
        %p207 = pneg %p124
        %p208 = pneg %p121
        %p209 = pneg %p150
        %p210 = pneg %p147
        %s211 = sand.u32 %s137, 1
        %s212 = scalar_lea.sflag [#allocation3], %s211
        %s213 = sand.u32 %s137, 1
        %s214 = smul.addr %s213, 8
        %s215 = scalar_lea.vmem [#allocation2], %s214
        %p216 = scmp.lt.s32.totalorder %s19, 1
        %s217 = scalar_select %p216, %s19, 1
        %s218 = smul.addr %s217, 8
        %s219 = scalar_lea.vmem %s0, %s218
        %v220 = vld [vmem:[%s219] sm:$0xff]
        %v221 = vld [vmem:[%s1] sm:$0xff]
        %v222 = vld [vmem:[%s1 + $0x8] sm:$0xff]
        %v223 = vld [vmem:[%s1 + $0x10] sm:$0xff]
        %v224 = vld [vmem:[%s1 + $0x18] sm:$0xff]
        %v225 = vld [vmem:[%s1 + $0x20] sm:$0xff]
        %v226 = vld [vmem:[%s1 + $0x28] sm:$0xff]
        %v227 = vld [vmem:[%s1 + $0x30] sm:$0xff]
        %v228 = vld [vmem:[%s1 + $0x38] sm:$0xff]
        %v229 = vld [vmem:[%s1 + $0x40] sm:$0xff]
        %v230 = vld [vmem:[%s1 + $0x48] sm:$0xff]
        %v231 = vld [vmem:[%s1 + $0x50] sm:$0xff]
        %v232 = vld [vmem:[%s1 + $0x58] sm:$0xff]
        %v233 = vld [vmem:[%s2] sm:$0x7]
        %v235 = vperm.slane %v233, 0
        %v236 = vperm.slane %v233, 1
        %v237 = vperm.slane %v233, 2
        %vm241 = vcmask 261120
        %v243 = vsel %vm241, %v220, 0
        %245 = vmatpush.msra.mxu0 0.0
        %246 = vmatpush.msra.mxu0 0.0
        %247 = vmatpush.msra.mxu0 0.0
        %248 = vmatpush.msra.mxu0 0.0
        %249 = vmatpush.msra.mxu0 0.0
        %250 = vmatpush.msra.mxu0 0.0
        %251 = vmatpush.msra.mxu0 0.0
        %252 = vmatpush.msra.mxu0 0.0
        %253 = vmatpush.msra.mxu0 0.0
        %254 = vmatpush.msra.mxu0 0.0
        %255 = vmatpush.msra.mxu0 0.0
        %256 = vmatpush.msra.mxu0 0.0
        %257 = vmatpush.msra.mxu0 %v230
        %258 = vmatpush.msra.mxu0 %v227
        %259 = vmatpush.msra.mxu0 %v224
        %260 = vmatpush.msra.mxu0 %v221
        %261 = vmatmul.f32.gmra.mxu0 %v243
        %v262 = vpop.f32.mrf.mxu0
        %v263 = vadd.f32 %v235, %v262
        %264 = vdwg.mxu0
        %265 = vmatpush.msra.mxu0 0.0
        %266 = vmatpush.msra.mxu0 0.0
        %267 = vmatpush.msra.mxu0 0.0
        %268 = vmatpush.msra.mxu0 0.0
        %269 = vmatpush.msra.mxu0 0.0
        %270 = vmatpush.msra.mxu0 0.0
        %271 = vmatpush.msra.mxu0 0.0
        %272 = vmatpush.msra.mxu0 0.0
        %273 = vmatpush.msra.mxu0 0.0
        %274 = vmatpush.msra.mxu0 0.0
        %275 = vmatpush.msra.mxu0 0.0
        %276 = vmatpush.msra.mxu0 0.0
        %277 = vmatpush.msra.mxu0 %v231
        %278 = vmatpush.msra.mxu0 %v228
        %279 = vmatpush.msra.mxu0 %v225
        %280 = vmatpush.msra.mxu0 %v222
        %281 = vmatmul.f32.gmra.mxu0 %v243
        %v282 = vpop.f32.mrf.mxu0
        %v283 = vadd.f32 %v236, %v282
        %284 = vdwg.mxu0
        %285 = vmatpush.msra.mxu0 0.0
        %286 = vmatpush.msra.mxu0 0.0
        %287 = vmatpush.msra.mxu0 0.0
        %288 = vmatpush.msra.mxu0 0.0
        %289 = vmatpush.msra.mxu0 0.0
        %290 = vmatpush.msra.mxu0 0.0
        %291 = vmatpush.msra.mxu0 0.0
        %292 = vmatpush.msra.mxu0 0.0
        %293 = vmatpush.msra.mxu0 0.0
        %294 = vmatpush.msra.mxu0 0.0
        %295 = vmatpush.msra.mxu0 0.0
        %296 = vmatpush.msra.mxu0 0.0
        %297 = vmatpush.msra.mxu0 %v232
        %298 = vmatpush.msra.mxu0 %v229
        %299 = vmatpush.msra.mxu0 %v226
        %300 = vmatpush.msra.mxu0 %v223
        %301 = vmatmul.f32.gmra.mxu0 %v243
        %v302 = vpop.f32.mrf.mxu0
        %v303 = vadd.f32 %v237, %v302
        %304 = vdwg.mxu0
        %v305 = vmul.f32 %v263, 0.17677669
        %v307 = vsel %vm241, %v305, 0
        %v310 = vsel %vm241, %v283, 0
        %312 = vmatpush.xpose.msra.mxu0 0.0
        %313 = vmatpush.xpose.msra.mxu0 0.0
        %314 = vmatpush.xpose.msra.mxu0 0.0
        %315 = vmatpush.xpose.msra.mxu0 0.0
        %316 = vmatpush.xpose.msra.mxu0 0.0
        %317 = vmatpush.xpose.msra.mxu0 0.0
        %318 = vmatpush.xpose.msra.mxu0 0.0
        %319 = vmatpush.xpose.msra.mxu0 0.0
        %320 = vmatpush.xpose.msra.mxu0 0.0
        %321 = vmatpush.xpose.msra.mxu0 0.0
        %322 = vmatpush.xpose.msra.mxu0 0.0
        %323 = vmatpush.xpose.msra.mxu0 0.0
        %324 = vmatpush.xpose.msra.mxu0 0.0
        %325 = vmatpush.xpose.msra.mxu0 0.0
        %326 = vmatpush.xpose.msra.mxu0 0.0
        %327 = vmatpush.xpose.msra.mxu0 %v310
        %328 = vmatmul.f32.gmra.mxu0 %v307
        %v329 = vpop.f32.mrf.mxu0
        %v330 = vadd.f32 0.0, %v329
        %331 = vdwg.mxu0
        %vm332 = vcmask 64512
        %v333 = vsel %vm332, %v330, -inf
        %334 = vmax.xlane.f32.xlu0 %v333
        %v335 = vpop.xlane.xlu0 %334
        %v336 = vsub.f32 %v330, %v335
        %v337 = vmul.f32 %v336, 1.442695
        %v338 = vpow.pop %v337
        %v339 = vsel %vm332, %v338, 0.0
        %340 = vadd.xlane.f32.xlu0 %v339
        %v341 = vpop.xlane.xlu0 %340
        %v342 = vrcp.pop %v341
        %v343 = vmul.f32 %v338, %v342
        %v345 = vsel %vm332, %v343, 0
        %347 = vmatpush.msra.mxu0 0.0
        %348 = vmatpush.msra.mxu0 0.0
        %349 = vmatpush.msra.mxu0 0.0
        %350 = vmatpush.msra.mxu0 0.0
        %351 = vmatpush.msra.mxu0 0.0
        %352 = vmatpush.msra.mxu0 0.0
        %353 = vmatpush.msra.mxu0 0.0
        %354 = vmatpush.msra.mxu0 0.0
        %355 = vmatpush.msra.mxu0 0.0
        %356 = vmatpush.msra.mxu0 0.0
        %357 = vmatpush.msra.mxu0 0.0
        %358 = vmatpush.msra.mxu0 0.0
        %359 = vmatpush.msra.mxu0 0.0
        %360 = vmatpush.msra.mxu0 0.0
        %361 = vmatpush.msra.mxu0 0.0
        %362 = vmatpush.msra.mxu0 %v303
        %363 = vmatmul.f32.gmra.mxu0 %v345
        %v364 = vpop.f32.mrf.mxu0
        %v365 = vadd.f32 0.0, %v364
        %366 = vdwg.mxu0
        %367 = vrot.lane.b32.xlu0 %v305, 96
        %v368 = vpop.permute.xlu0 %367
        %369 = vrot.lane.b32.xlu0 %v283, 96
        %v370 = vpop.permute.xlu0 %369
        %v371 = vsel %vm241, %v368, 0
        %v373 = vsel %vm241, %v370, 0
        %375 = vmatpush.xpose.msra.mxu0 0.0
        %376 = vmatpush.xpose.msra.mxu0 0.0
        %377 = vmatpush.xpose.msra.mxu0 0.0
        %378 = vmatpush.xpose.msra.mxu0 0.0
        %379 = vmatpush.xpose.msra.mxu0 0.0
        %380 = vmatpush.xpose.msra.mxu0 0.0
        %381 = vmatpush.xpose.msra.mxu0 0.0
        %382 = vmatpush.xpose.msra.mxu0 0.0
        %383 = vmatpush.xpose.msra.mxu0 0.0
        %384 = vmatpush.xpose.msra.mxu0 0.0
        %385 = vmatpush.xpose.msra.mxu0 0.0
        %386 = vmatpush.xpose.msra.mxu0 0.0
        %387 = vmatpush.xpose.msra.mxu0 0.0
        %388 = vmatpush.xpose.msra.mxu0 0.0
        %389 = vmatpush.xpose.msra.mxu0 0.0
        %390 = vmatpush.xpose.msra.mxu0 %v373
        %391 = vmatmul.f32.gmra.mxu0 %v371
        %v392 = vpop.f32.mrf.mxu0
        %v393 = vadd.f32 0.0, %v392
        %394 = vdwg.mxu0
        %v395 = vsel %vm332, %v393, -inf
        %396 = vmax.xlane.f32.xlu0 %v395
        %v397 = vpop.xlane.xlu0 %396
        %v398 = vsub.f32 %v393, %v397
        %v399 = vmul.f32 %v398, 1.442695
        %v400 = vpow.pop %v399
        %v401 = vsel %vm332, %v400, 0.0
        %402 = vadd.xlane.f32.xlu0 %v401
        %v403 = vpop.xlane.xlu0 %402
        %v404 = vrcp.pop %v403
        %v405 = vmul.f32 %v400, %v404
        %407 = vrot.lane.b32.xlu0 %v303, 96
        %v408 = vpop.permute.xlu0 %407
        %v411 = vsel %vm332, %v405, 0
        %413 = vmatpush.msra.mxu0 0.0
        %414 = vmatpush.msra.mxu0 0.0
        %415 = vmatpush.msra.mxu0 0.0
        %416 = vmatpush.msra.mxu0 0.0
        %417 = vmatpush.msra.mxu0 0.0
        %418 = vmatpush.msra.mxu0 0.0
        %419 = vmatpush.msra.mxu0 0.0
        %420 = vmatpush.msra.mxu0 0.0
        %421 = vmatpush.msra.mxu0 0.0
        %422 = vmatpush.msra.mxu0 0.0
        %423 = vmatpush.msra.mxu0 0.0
        %424 = vmatpush.msra.mxu0 0.0
        %425 = vmatpush.msra.mxu0 0.0
        %426 = vmatpush.msra.mxu0 0.0
        %427 = vmatpush.msra.mxu0 0.0
        %428 = vmatpush.msra.mxu0 %v408
        %429 = vmatmul.f32.gmra.mxu0 %v411
        %v430 = vpop.f32.mrf.mxu0
        %v431 = vadd.f32 0.0, %v430
        %432 = vdwg.mxu0
        %433 = vrot.lane.b32.xlu0 %v305, 64
        %v434 = vpop.permute.xlu0 %433
        %435 = vrot.lane.b32.xlu0 %v283, 64
        %v436 = vpop.permute.xlu0 %435
        %v437 = vsel %vm241, %v434, 0
        %v439 = vsel %vm241, %v436, 0
        %441 = vmatpush.xpose.msra.mxu0 0.0
        %442 = vmatpush.xpose.msra.mxu0 0.0
        %443 = vmatpush.xpose.msra.mxu0 0.0
        %444 = vmatpush.xpose.msra.mxu0 0.0
        %445 = vmatpush.xpose.msra.mxu0 0.0
        %446 = vmatpush.xpose.msra.mxu0 0.0
        %447 = vmatpush.xpose.msra.mxu0 0.0
        %448 = vmatpush.xpose.msra.mxu0 0.0
        %449 = vmatpush.xpose.msra.mxu0 0.0
        %450 = vmatpush.xpose.msra.mxu0 0.0
        %451 = vmatpush.xpose.msra.mxu0 0.0
        %452 = vmatpush.xpose.msra.mxu0 0.0
        %453 = vmatpush.xpose.msra.mxu0 0.0
        %454 = vmatpush.xpose.msra.mxu0 0.0
        %455 = vmatpush.xpose.msra.mxu0 0.0
        %456 = vmatpush.xpose.msra.mxu0 %v439
        %457 = vmatmul.f32.gmra.mxu0 %v437
        %v458 = vpop.f32.mrf.mxu0
        %v459 = vadd.f32 0.0, %v458
        %460 = vdwg.mxu0
        %v461 = vsel %vm332, %v459, -inf
        %462 = vmax.xlane.f32.xlu0 %v461
        %v463 = vpop.xlane.xlu0 %462
        %v464 = vsub.f32 %v459, %v463
        %v465 = vmul.f32 %v464, 1.442695
        %v466 = vpow.pop %v465
        %v467 = vsel %vm332, %v466, 0.0
        %468 = vadd.xlane.f32.xlu0 %v467
        %v469 = vpop.xlane.xlu0 %468
        %v470 = vrcp.pop %v469
        %v471 = vmul.f32 %v466, %v470
        %472 = vrot.lane.b32.xlu0 %v303, 64
        %v473 = vpop.permute.xlu0 %472
        %v476 = vsel %vm332, %v471, 0
        %478 = vmatpush.msra.mxu0 0.0
        %479 = vmatpush.msra.mxu0 0.0
        %480 = vmatpush.msra.mxu0 0.0
        %481 = vmatpush.msra.mxu0 0.0
        %482 = vmatpush.msra.mxu0 0.0
        %483 = vmatpush.msra.mxu0 0.0
        %484 = vmatpush.msra.mxu0 0.0
        %485 = vmatpush.msra.mxu0 0.0
        %486 = vmatpush.msra.mxu0 0.0
        %487 = vmatpush.msra.mxu0 0.0
        %488 = vmatpush.msra.mxu0 0.0
        %489 = vmatpush.msra.mxu0 0.0
        %490 = vmatpush.msra.mxu0 0.0
        %491 = vmatpush.msra.mxu0 0.0
        %492 = vmatpush.msra.mxu0 0.0
        %493 = vmatpush.msra.mxu0 %v473
        %494 = vmatmul.f32.gmra.mxu0 %v476
        %v495 = vpop.f32.mrf.mxu0
        %v496 = vadd.f32 0.0, %v495
        %497 = vdwg.mxu0
        %498 = vrot.lane.b32.xlu0 %v305, 32
        %v499 = vpop.permute.xlu0 %498
        %500 = vrot.lane.b32.xlu0 %v283, 32
        %v501 = vpop.permute.xlu0 %500
        %v502 = vsel %vm241, %v499, 0
        %v504 = vsel %vm241, %v501, 0
        %506 = vmatpush.xpose.msra.mxu0 0.0
        %507 = vmatpush.xpose.msra.mxu0 0.0
        %508 = vmatpush.xpose.msra.mxu0 0.0
        %509 = vmatpush.xpose.msra.mxu0 0.0
        %510 = vmatpush.xpose.msra.mxu0 0.0
        %511 = vmatpush.xpose.msra.mxu0 0.0
        %512 = vmatpush.xpose.msra.mxu0 0.0
        %513 = vmatpush.xpose.msra.mxu0 0.0
        %514 = vmatpush.xpose.msra.mxu0 0.0
        %515 = vmatpush.xpose.msra.mxu0 0.0
        %516 = vmatpush.xpose.msra.mxu0 0.0
        %517 = vmatpush.xpose.msra.mxu0 0.0
        %518 = vmatpush.xpose.msra.mxu0 0.0
        %519 = vmatpush.xpose.msra.mxu0 0.0
        %520 = vmatpush.xpose.msra.mxu0 0.0
        %521 = vmatpush.xpose.msra.mxu0 %v504
        %522 = vmatmul.f32.gmra.mxu0 %v502
        %v523 = vpop.f32.mrf.mxu0
        %v524 = vadd.f32 0.0, %v523
        %525 = vdwg.mxu0
        %v526 = vsel %vm332, %v524, -inf
        %527 = vmax.xlane.f32.xlu0 %v526
        %v528 = vpop.xlane.xlu0 %527
        %v529 = vsub.f32 %v524, %v528
        %v530 = vmul.f32 %v529, 1.442695
        %v531 = vpow.pop %v530
        %v532 = vsel %vm332, %v531, 0.0
        %533 = vadd.xlane.f32.xlu0 %v532
        %v534 = vpop.xlane.xlu0 %533
        %v535 = vrcp.pop %v534
        %v536 = vmul.f32 %v531, %v535
        %537 = vrot.lane.b32.xlu0 %v303, 32
        %v538 = vpop.permute.xlu0 %537
        %v541 = vsel %vm332, %v536, 0
        %543 = vmatpush.msra.mxu0 0.0
        %544 = vmatpush.msra.mxu0 0.0
        %545 = vmatpush.msra.mxu0 0.0
        %546 = vmatpush.msra.mxu0 0.0
        %547 = vmatpush.msra.mxu0 0.0
        %548 = vmatpush.msra.mxu0 0.0
        %549 = vmatpush.msra.mxu0 0.0
        %550 = vmatpush.msra.mxu0 0.0
        %551 = vmatpush.msra.mxu0 0.0
        %552 = vmatpush.msra.mxu0 0.0
        %553 = vmatpush.msra.mxu0 0.0
        %554 = vmatpush.msra.mxu0 0.0
        %555 = vmatpush.msra.mxu0 0.0
        %556 = vmatpush.msra.mxu0 0.0
        %557 = vmatpush.msra.mxu0 0.0
        %558 = vmatpush.msra.mxu0 %v538
        %559 = vmatmul.f32.gmra.mxu0 %v541
        %v560 = vpop.f32.mrf.mxu0
        %v561 = vadd.f32 0.0, %v560
        %562 = vdwg.mxu0
        %564 = vrot.lane.b32.xlu0 %v431, 32
        %v565 = vpop.permute.xlu0 %564
        %568 = vrot.lane.b32.xlu0 %v496, 64
        %v569 = vpop.permute.xlu0 %568
        %572 = vrot.lane.b32.xlu0 %v561, 96
        %v573 = vpop.permute.xlu0 %572
        %v575 = vsel %vm241, %v365, %v565
        %vm576 = vcmask 523264
        %v577 = vsel %vm576, %v575, %v569
        %vm578 = vcmask 785408
        %v579 = vsel %vm578, %v577, %v573
        %v580 = vld [vmem:[%s3] sm:$0xff]
        %v581 = vld [vmem:[%s3 + $0x8] sm:$0xff]
        %v582 = vld [vmem:[%s3 + $0x10] sm:$0xff]
        %v583 = vld [vmem:[%s3 + $0x18] sm:$0xff]
        %v584 = vld [vmem:[%s3 + $0x20] sm:$0xff]
        %v585 = vld [vmem:[%s3 + $0x28] sm:$0xff]
        %v586 = vld [vmem:[%s3 + $0x30] sm:$0xff]
        %v587 = vld [vmem:[%s3 + $0x38] sm:$0xff]
        %v588 = vld [vmem:[%s3 + $0x40] sm:$0xff]
        %v589 = vld [vmem:[%s3 + $0x48] sm:$0xff]
        %v590 = vld [vmem:[%s3 + $0x50] sm:$0xff]
        %v591 = vld [vmem:[%s3 + $0x58] sm:$0xff]
        %v592 = vld [vmem:[%s3 + $0x60] sm:$0xff]
        %v593 = vld [vmem:[%s3 + $0x68] sm:$0xff]
        %v594 = vld [vmem:[%s3 + $0x70] sm:$0xff]
        %v595 = vld [vmem:[%s3 + $0x78] sm:$0xff]
        %v596 = vld [vmem:[%s4] sm:$0x1]
        %v598 = vperm.slane %v596, 0
        %600 = vmatpush.msra.mxu0 %v595
        %601 = vmatpush.msra.mxu0 %v594
        %602 = vmatpush.msra.mxu0 %v593
        %603 = vmatpush.msra.mxu0 %v592
        %604 = vmatpush.msra.mxu0 %v591
        %605 = vmatpush.msra.mxu0 %v590
        %606 = vmatpush.msra.mxu0 %v589
        %607 = vmatpush.msra.mxu0 %v588
        %608 = vmatpush.msra.mxu0 %v587
        %609 = vmatpush.msra.mxu0 %v586
        %610 = vmatpush.msra.mxu0 %v585
        %611 = vmatpush.msra.mxu0 %v584
        %612 = vmatpush.msra.mxu0 %v583
        %613 = vmatpush.msra.mxu0 %v582
        %614 = vmatpush.msra.mxu0 %v581
        %615 = vmatpush.msra.mxu0 %v580
        %616 = vmatmul.f32.gmra.mxu0 %v579
        %v617 = vpop.f32.mrf.mxu0
        %v618 = vadd.f32 %v598, %v617
        %619 = vdwg.mxu0
        %620 = vst.msk [vmem:[%s215] sm:$0xff] %vm241, %v618
        %s621 = sand.u32 %s137, 1
        %s622 = scalar_lea.sflag [#allocation3], %s621
        %s623 = sand.u32 %s137, 1
        %s624 = smul.addr %s623, 8
        %s625 = scalar_lea.vmem [#allocation2], %s624
        // Predicated region
        $region41: #{tpu_custom_call.1} parent=39 // pred_check
          %p626 = pneg %p147
        $region42: #{tpu_custom_call.1} parent=39 // pred_check_branch
          %628 = sbr.rel (%p626) target = $region44
        $region43: #{tpu_custom_call.1} parent=39 // pred_region
          %630 = vsyncadd %s622, 0
          %s631 = smul.addr %s19, 8
          %s632 = scalar_lea.hbm %s5, %s631
          %s634 = sshll.u32 %s625, 4
          %s635 = int_to_ptr.vmem [resolvable:$true] %s634
          %s636 = sshll.u32 %s632, 4
          %s637 = int_to_ptr.hbm [resolvable:$true] %s636
          %639 = dma.vmem_to_hbm [thread:$0]  %s635, 128, %s637, %s622
        $region44: #{tpu_custom_call.1} parent=39 // pred_fallthru
          _
      $region40: #{tpu_custom_call.1} parent=5 // pred_fallthru
        _
      %p640 = scmp.le.s32.totalorder 2, %s14
      // Predicated region
      $region45: #{tpu_custom_call.1} parent=5 // pred_check
        %p641 = pneg %p640
      $region46: #{tpu_custom_call.1} parent=5 // pred_check_branch
        %643 = sbr.rel (%p641) target = $region48
      $region47: #{tpu_custom_call.1} parent=5 // pred_region
        %s644 = ssub.s32 %s14, 2
        // Predicated region
        $region49: #{tpu_custom_call.1} parent=47 // pred_check
          %p645 = pneg %p153
        $region50: #{tpu_custom_call.1} parent=47 // pred_check_branch
          %647 = sbr.rel (%p645) target = $region52
        $region51: #{tpu_custom_call.1} parent=47 // pred_region
          %s648 = sand.u32 %s138, 1
          %s649 = scalar_lea.sflag [#allocation3], %s648
          %s650 = sand.u32 %s138, 1
          %s651 = smul.addr %s650, 8
          %s652 = scalar_lea.vmem [#allocation2], %s651
          %654 = dma.done %s649, 128
        $region52: #{tpu_custom_call.1} parent=47 // pred_fallthru
          _
      $region48: #{tpu_custom_call.1} parent=5 // pred_fallthru
        _
    $region6: #{tpu_custom_call.1} parent=1 // loop_footer
      %s18 = sadd.s32 1, %s14
    $region7: #{tpu_custom_call.1} parent=1 // loop_footer_branch
      %13 = sbr.rel target = $region3
    $region8: #{tpu_custom_call.1} parent=1 // loop_exit
      _
    %655 = vsyncpa [#allocation3], 1
    %s656 = scalar_lea.sflag [#allocation3], 1
    %657 = vsyncpa %s656, 1

</llo_original>
